<compile_context>
chip_gen: v7x
topology: tpu7x:2x2x1
jax: 0.10.0
libtpu: 0.0.40
codegen_flags: <defaults>
</compile_context>

<pallas_src>
import functools
import math

import jax
import jax.numpy as jnp
from jax.experimental import pallas as pl
from jax.experimental.pallas import tpu as pltpu


def _se_epilogue(pooled, w1t_ref, b1_ref, w2t_ref, b2_ref, out_ref):
    """pooled (n_tile, C) f32 -> FC1 -> ReLU -> FC2 -> sigmoid -> out_ref."""
    h = jnp.dot(pooled, w1t_ref[...],
                preferred_element_type=jnp.float32) + b1_ref[...]
    h = jnp.maximum(h, 0.0)                                   # ReLU
    o = jnp.dot(h, w2t_ref[...],
                preferred_element_type=jnp.float32) + b2_ref[...]
    gate = 1.0 / (1.0 + jnp.exp(-o))                          # sigmoid (EUP exp)
    out_ref[...] = gate.astype(out_ref.dtype)


def _se_kernel_single(x_ref, w1t_ref, b1_ref, w2t_ref, b2_ref, out_ref, *,
                      inv_hw):
    # Whole spatial extent in one block: pool + FCs in a single pass.
    pooled = jnp.sum(x_ref[...], axis=-1, dtype=jnp.float32) * inv_hw
    _se_epilogue(pooled, w1t_ref, b1_ref, w2t_ref, b2_ref, out_ref)


def _se_kernel_chunked(x_ref, w1t_ref, b1_ref, w2t_ref, b2_ref, out_ref,
                       acc_ref, *, hw_total, hw_chunk, needs_mask):
    # x_ref  : (n_tile, C, hw_chunk)   input chunk (input dtype)
    # acc_ref: (n_tile, C) f32         running spatial sum
    k = pl.program_id(1)

    @pl.when(k == 0)
    def _init():
        acc_ref[...] = jnp.zeros_like(acc_ref)

    xb = x_ref[...]                                           # (n_tile, C, hw_chunk)
    if needs_mask:
        # Ragged tail chunk: zero lanes past the true spatial extent so the
        # partial sum (and the mean) stays exact.
        col = jax.lax.broadcasted_iota(jnp.int32, xb.shape, 2)
        valid = (k * hw_chunk + col) < hw_total
        xb = jnp.where(valid, xb, jnp.zeros_like(xb))

    # Accumulate in f32 without materializing an f32 copy of the whole block.
    acc_ref[...] += jnp.sum(xb, axis=-1, dtype=jnp.float32)   # (n_tile, C)

    @pl.when(k == pl.num_programs(1) - 1)
    def _finalize():
        pooled = acc_ref[...] * (1.0 / float(hw_total))       # mean over H*W
        _se_epilogue(pooled, w1t_ref, b1_ref, w2t_ref, b2_ref, out_ref)


def _pick_tiles(N, C, HW, itemsize, budget=8 * 1024 * 1024):
    """Choose (n_tile, hw_chunk).

    * n_tile is the largest multiple-of-8 divisor of N (or N itself when N <= 8
      or N is not a multiple of 8) whose full-spatial block fits `budget`.
    * If even the smallest batch tile over-fills the budget, the spatial axis
      is chunked in multiples of 128 lanes.
    Layouts obey the (8, 128) rule: hw_chunk is a multiple of 128 or the full
    HW; C is always the full channel dim; a sub-N batch tile is a multiple of 8.
    """
    bytes_per_batch = C * HW * itemsize
    if N <= 8 or N % 8 != 0:
        cands = [N]
    else:
        cands = [d for d in range(8, N + 1, 8) if N % d == 0]
    fitting = [d for d in cands if d * bytes_per_batch <= budget]
    n_tile = max(fitting) if fitting else min(cands)

    max_chunk = max(1, budget // max(1, n_tile * C * itemsize))
    if max_chunk >= HW:
        hw_chunk = HW
    else:
        hw_chunk = (max_chunk // 128) * 128
        if hw_chunk < 128:
            hw_chunk = min(128, HW)
        hw_chunk = min(hw_chunk, HW)
    return n_tile, hw_chunk


def squeeze_excitation(x, w1, b1, w2, b2):
    """x: (N, C, H, W) NCHW. Returns the SE gate with shape (N, C, 1, 1)."""
    N, C, H, W = x.shape
    Cmid = w1.shape[0]
    HW = H * W
    x_flat = x.reshape(N, C, HW)
    itemsize = jnp.dtype(x.dtype).itemsize

    # Pad the squeezed channel dim to a multiple of 8 sublanes (min 8) so tiny
    # Cmid (e.g. 1) never yields degenerate matmul shapes.  The extra w2t rows
    # are zero, so the padded hidden units contribute nothing to the output.
    Cmid_pad = max(8, -(-Cmid // 8) * 8)
    w1t = jnp.zeros((C, Cmid_pad), jnp.float32).at[:, :Cmid].set(
        w1.astype(jnp.float32).T)
    b1p = jnp.zeros((1, Cmid_pad), jnp.float32).at[:, :Cmid].set(
        b1.astype(jnp.float32)[None, :])
    w2t = jnp.zeros((Cmid_pad, C), jnp.float32).at[:Cmid, :].set(
        w2.astype(jnp.float32).T)
    b2p = b2.astype(jnp.float32).reshape(1, C)

    n_tile, hw_chunk = _pick_tiles(N, C, HW, itemsize)
    grid_n = N // n_tile
    grid_k = pl.cdiv(HW, hw_chunk)

    param_bytes = 4 * (w1t.size + b1p.size + w2t.size + b2p.size)
    cost = pl.CostEstimate(
        flops=int(N * C * HW + 4 * N * C * Cmid_pad),
        transcendentals=int(N * C),
        bytes_accessed=int(x_flat.size * itemsize + param_bytes
                           + N * C * itemsize),
    )

    weight_specs = [
        pl.BlockSpec((C, Cmid_pad), lambda *idx: (0, 0)),
        pl.BlockSpec((1, Cmid_pad), lambda *idx: (0, 0)),
        pl.BlockSpec((Cmid_pad, C), lambda *idx: (0, 0)),
        pl.BlockSpec((1, C), lambda *idx: (0, 0)),
    ]

    if grid_k == 1:
        # Fast path: entire spatial extent per block, single-pass kernel.
        kernel = functools.partial(_se_kernel_single, inv_hw=1.0 / float(HW))
        grid_spec = pltpu.PrefetchScalarGridSpec(
            num_scalar_prefetch=0,
            grid=(grid_n,),
            in_specs=[pl.BlockSpec((n_tile, C, hw_chunk),
                                   lambda n: (n, 0, 0))] + weight_specs,
            out_specs=pl.BlockSpec((n_tile, C), lambda n: (n, 0)),
            scratch_shapes=[],
        )
        dim_sem = ("parallel",)
    else:
        # Slow path: chunked spatial reduction (reduction axis last in grid).
        needs_mask = (HW % hw_chunk) != 0
        kernel = functools.partial(_se_kernel_chunked, hw_total=HW,
                                   hw_chunk=hw_chunk, needs_mask=needs_mask)
        grid_spec = pltpu.PrefetchScalarGridSpec(
            num_scalar_prefetch=0,
            grid=(grid_n, grid_k),
            in_specs=[pl.BlockSpec((n_tile, C, hw_chunk),
                                   lambda n, k: (n, 0, k))] + weight_specs,
            out_specs=pl.BlockSpec((n_tile, C), lambda n, k: (n, 0)),
            scratch_shapes=[pltpu.VMEM((n_tile, C), jnp.float32)],
        )
        dim_sem = ("parallel", "arbitrary")

    out = pl.pallas_call(
        kernel,
        out_shape=jax.ShapeDtypeStruct((N, C), x.dtype),
        grid_spec=grid_spec,
        compiler_params=pltpu.CompilerParams(
            dimension_semantics=dim_sem,
            vmem_limit_bytes=32 * 1024 * 1024,
        ),
        cost_estimate=cost,
    )(x_flat, w1t, b1p, w2t, b2p)

    return out.reshape(N, C, 1, 1)


def init_params(key, channels, reduction=16):
    """Deterministic parameter init matching the module's shapes.

    conv1: Conv2d(channels, ceil(channels/reduction), k=1) -> weight (Cmid, C)
    conv2: Conv2d(Cmid, channels, k=1)                     -> weight (C, Cmid)
    (1x1 conv weights of shape (O, I, 1, 1) are stored squeezed to (O, I).)
    """
    out_channels = math.ceil(channels / reduction)
    k1, k2, k3, k4 = jax.random.split(key, 4)
    bound1 = 1.0 / math.sqrt(channels)
    bound2 = 1.0 / math.sqrt(out_channels)
    w1 = jax.random.uniform(k1, (out_channels, channels), jnp.float32,
                            -bound1, bound1)
    b1 = jax.random.uniform(k2, (out_channels,), jnp.float32, -bound1, bound1)
    w2 = jax.random.uniform(k3, (channels, out_channels), jnp.float32,
                            -bound2, bound2)
    b2 = jax.random.uniform(k4, (channels,), jnp.float32, -bound2, bound2)
    return w1, b1, w2, b2


def reference_forward(x, w1, b1, w2, b2):
    """Plain-JAX reference mirroring the PyTorch forward, for verification."""
    pooled = jnp.mean(x, axis=(2, 3))                       # (N, C)
    h = jnp.maximum(pooled @ w1.T + b1, 0.0)                # (N, Cmid)
    o = h @ w2.T + b2                                       # (N, C)
    return jax.nn.sigmoid(o)[:, :, None, None]              # (N, C, 1, 1)


if __name__ == "__main__":
    key = jax.random.PRNGKey(0)
    kx, kp = jax.random.split(key)

    N, C, H, W = 2, 4, 16, 16
    reduction = 16
    x = jax.random.normal(kx, (N, C, H, W), jnp.float32)
    w1, b1, w2, b2 = init_params(kp, C, reduction)

    weight = squeeze_excitation(x, w1, b1, w2, b2)
    weight = jax.block_until_ready(weight)

    ref = reference_forward(x, w1, b1, w2, b2)
    assert weight.shape == (N, C, 1, 1), weight.shape
    assert jnp.allclose(weight, ref, atol=1e-5, rtol=1e-5), (
        f"max abs err = {jnp.max(jnp.abs(weight - ref))}")

    print("KERNEL_OK")
</pallas_src>

<mosaic_0001>
module attributes {stable_mosaic.version = 11 : i64} {
  func.func @_se_kernel_single(%arg0: i32, %arg1: memref<2x4x256xf32, #tpu.memory_space<vmem>>, %arg2: memref<4x8xf32, #tpu.memory_space<vmem>>, %arg3: memref<1x8xf32, #tpu.memory_space<vmem>>, %arg4: memref<8x4xf32, #tpu.memory_space<vmem>>, %arg5: memref<1x4xf32, #tpu.memory_space<vmem>>, %arg6: memref<2x4xf32, #tpu.memory_space<vmem>>) attributes {dimension_semantics = [#tpu.dimension_semantics<parallel>], iteration_bounds = array<i64: 1>, scalar_prefetch = 0 : i64, scratch_operands = 0 : i64, tpu.core_type = #tpu.core_type<tc>, window_params = [{transform_indices = @transform_0, window_bounds = array<i64: 2, 4, 256>}, {pipeline_mode = #tpu.pipeline_mode<synchronous>, transform_indices = @transform_1, window_bounds = array<i64: 4, 8>}, {pipeline_mode = #tpu.pipeline_mode<synchronous>, transform_indices = @transform_2, window_bounds = array<i64: 1, 8>}, {pipeline_mode = #tpu.pipeline_mode<synchronous>, transform_indices = @transform_3, window_bounds = array<i64: 8, 4>}, {pipeline_mode = #tpu.pipeline_mode<synchronous>, transform_indices = @transform_4, window_bounds = array<i64: 1, 4>}, {transform_indices = @transform_5, window_bounds = array<i64: 2, 4>}]} {
    %c0 = arith.constant 0 : index
    %c0_0 = arith.constant 0 : index
    %c0_1 = arith.constant 0 : index
    %0 = vector.load %arg1[%c0, %c0_0, %c0_1] : memref<2x4x256xf32, #tpu.memory_space<vmem>>, vector<2x4x256xf32>
    %cst = arith.constant dense<0.000000e+00> : vector<2x4xf32>
    %1 = vector.multi_reduction <add>, %0, %cst [2] : vector<2x4x256xf32> to vector<2x4xf32>
    %cst_2 = arith.constant 3.906250e-03 : f32
    %2 = vector.broadcast %cst_2 : f32 to vector<2x4xf32>
    %3 = arith.mulf %1, %2 : vector<2x4xf32>
    %c0_3 = arith.constant 0 : index
    %c0_4 = arith.constant 0 : index
    %4 = vector.load %arg2[%c0_3, %c0_4] : memref<4x8xf32, #tpu.memory_space<vmem>>, vector<4x8xf32>
    %cst_5 = arith.constant dense<0.000000e+00> : vector<2x8xf32>
    %5 = tpu.matmul %3, %4, %cst_5 {dimension_numbers = #tpu.dot_dimension_numbers<[1], [0], [0], [1], [0, 0, 1, 1], [], []>} : vector<2x4xf32>, vector<4x8xf32>, vector<2x8xf32> -> vector<2x8xf32>
    %c0_6 = arith.constant 0 : index
    %c0_7 = arith.constant 0 : index
    %6 = vector.load %arg3[%c0_6, %c0_7] : memref<1x8xf32, #tpu.memory_space<vmem>>, vector<1x8xf32>
    %7 = vector.broadcast %6 : vector<1x8xf32> to vector<2x8xf32>
    %8 = arith.addf %5, %7 : vector<2x8xf32>
    %cst_8 = arith.constant 0.000000e+00 : f32
    %9 = vector.broadcast %cst_8 : f32 to vector<2x8xf32>
    %10 = arith.maximumf %8, %9 : vector<2x8xf32>
    %c0_9 = arith.constant 0 : index
    %c0_10 = arith.constant 0 : index
    %11 = vector.load %arg4[%c0_9, %c0_10] : memref<8x4xf32, #tpu.memory_space<vmem>>, vector<8x4xf32>
    %cst_11 = arith.constant dense<0.000000e+00> : vector<2x4xf32>
    %12 = tpu.matmul %10, %11, %cst_11 {dimension_numbers = #tpu.dot_dimension_numbers<[1], [0], [0], [1], [0, 0, 1, 1], [], []>} : vector<2x8xf32>, vector<8x4xf32>, vector<2x4xf32> -> vector<2x4xf32>
    %c0_12 = arith.constant 0 : index
    %c0_13 = arith.constant 0 : index
    %13 = vector.load %arg5[%c0_12, %c0_13] : memref<1x4xf32, #tpu.memory_space<vmem>>, vector<1x4xf32>
    %14 = vector.broadcast %13 : vector<1x4xf32> to vector<2x4xf32>
    %15 = arith.addf %12, %14 : vector<2x4xf32>
    %cst_14 = arith.constant 0.000000e+00 : f32
    %16 = vector.broadcast %cst_14 : f32 to vector<2x4xf32>
    %17 = arith.subf %16, %15 : vector<2x4xf32>
    %18 = math.exp %17 : vector<2x4xf32>
    %cst_15 = arith.constant 1.000000e+00 : f32
    %19 = vector.broadcast %cst_15 : f32 to vector<2x4xf32>
    %20 = arith.addf %19, %18 : vector<2x4xf32>
    %cst_16 = arith.constant 1.000000e+00 : f32
    %21 = vector.broadcast %cst_16 : f32 to vector<2x4xf32>
    %22 = arith.divf %21, %20 : vector<2x4xf32>
    %c0_17 = arith.constant 0 : index
    %c0_18 = arith.constant 0 : index
    %23 = vector.load %arg6[%c0_17, %c0_18] : memref<2x4xf32, #tpu.memory_space<vmem>>, vector<2x4xf32>
    tpu.vector_store %arg6[%c0_17, %c0_18], %22 {strides = array<i32>} : memref<2x4xf32, #tpu.memory_space<vmem>>, vector<2x4xf32>,
    return
  }
  func.func @transform_0(%arg0: i32) -> (i32, i32, i32) {
    %c0_i32 = arith.constant 0 : i32
    %c0_i32_0 = arith.constant 0 : i32
    %c0_i32_1 = arith.constant 0 : i32
    return %arg0, %c0_i32, %c0_i32_0 : i32, i32, i32
  }
  func.func @transform_1(%arg0: i32) -> (i32, i32) {
    %c0_i32 = arith.constant 0 : i32
    %c0_i32_0 = arith.constant 0 : i32
    %c0_i32_1 = arith.constant 0 : i32
    return %c0_i32, %c0_i32_0 : i32, i32
  }
  func.func @transform_2(%arg0: i32) -> (i32, i32) {
    %c0_i32 = arith.constant 0 : i32
    %c0_i32_0 = arith.constant 0 : i32
    %c0_i32_1 = arith.constant 0 : i32
    return %c0_i32, %c0_i32_0 : i32, i32
  }
  func.func @transform_3(%arg0: i32) -> (i32, i32) {
    %c0_i32 = arith.constant 0 : i32
    %c0_i32_0 = arith.constant 0 : i32
    %c0_i32_1 = arith.constant 0 : i32
    return %c0_i32, %c0_i32_0 : i32, i32
  }
  func.func @transform_4(%arg0: i32) -> (i32, i32) {
    %c0_i32 = arith.constant 0 : i32
    %c0_i32_0 = arith.constant 0 : i32
    %c0_i32_1 = arith.constant 0 : i32
    return %c0_i32, %c0_i32_0 : i32, i32
  }
  func.func @transform_5(%arg0: i32) -> (i32, i32) {
    %c0_i32 = arith.constant 0 : i32
    %c0_i32_0 = arith.constant 0 : i32
    return %arg0, %c0_i32 : i32, i32
  }
}

</mosaic_0001>

<llo_original>
// kernel: tpu_custom_call.1
$region0: #{tpu_custom_call.1}
  #allocation0 [shape = 'u32[]', space=smem, size = 0x4, offset = 0x4, fixed_abs, tag = 'smem constant byte address 0x4 - core index']
  #allocation1 [shape = 'u32[144,128]{1,0:T(1,128)}', space=vmem, size = 0x12000, scoped, tag = 'internal scratch']
  %s0 = inlined_call_operand.hbm [shape: f32[2,4,256], index: 0, kind: input, shape index: {}]
  %s1 = inlined_call_operand.vmem [shape: f32[4,8], index: 1, kind: input, shape index: {}]
  %s2 = inlined_call_operand.vmem [shape: f32[1,8], index: 2, kind: input, shape index: {}]
  %s3 = inlined_call_operand.vmem [shape: f32[8,4], index: 3, kind: input, shape index: {}]
  %s4 = inlined_call_operand.vmem [shape: f32[1,4], index: 4, kind: input, shape index: {}]
  %s5 = inlined_call_operand.hbm [shape: f32[2,4], index: 5, kind: output, shape index: {}]
  %s6 = sld [smem:[#allocation0]]
  $region34: #{tpu_custom_call.1} parent=0
    _
  %s8 = ssub.s32 1, %s6
  %s9 = scalar_select 0, %s8, %s6
  $region1: #{tpu_custom_call.1} parent=0
    #allocation2 [shape = 'u8[8192]{0}', space=vmem, size = 0x2000, scoped, tag = 'input window, operand 0, single buffered']
    #allocation3 [shape = 's32[1]{0}', space=sflag, size = 0x4, scoped, tag = 'scoped memory for tpu_custom_call.1']
    #allocation4 [shape = 's32[1]{0}', space=sflag, size = 0x4, scoped, tag = 'scoped memory for tpu_custom_call.1']
    #allocation5 [shape = 'u8[1024]{0}', space=vmem, size = 0x400, scoped, tag = 'output window, operand 0, single buffered']
    %10 = vsyncpa [#allocation3], 0
    %11 = vsyncpa [#allocation4], 0
    // Predicated region
    $region2: #{tpu_custom_call.1} parent=1 // pred_check
      _
    $region3: #{tpu_custom_call.1} parent=1 // pred_check_branch
      %13 = sbr.rel (0) target = $region5
    $region4: #{tpu_custom_call.1} parent=1 // pred_region
      %s15 = ssub.s32 256, 256
      %16 = vsyncadd [#allocation3], %s15
      %s17 = sshll.u32 [#allocation2], 4
      %s18 = int_to_ptr.vmem [resolvable:$true] %s17
      %23 = dma.hbm_to_vmem [thread:$0]  %s0, 256, %s18, [#allocation3], 128, 128, 8
    $region5: #{tpu_custom_call.1} parent=1 // pred_fallthru
      _
    // Predicated region
    $region6: #{tpu_custom_call.1} parent=1 // pred_check
      _
    $region7: #{tpu_custom_call.1} parent=1 // pred_check_branch
      %25 = sbr.rel (0) target = $region9
    $region8: #{tpu_custom_call.1} parent=1 // pred_region
      _
    $region9: #{tpu_custom_call.1} parent=1 // pred_fallthru
      _
    // Predicated region
    $region10: #{tpu_custom_call.1} parent=1 // pred_check
      _
    $region11: #{tpu_custom_call.1} parent=1 // pred_check_branch
      %27 = sbr.rel (0) target = $region13
    $region12: #{tpu_custom_call.1} parent=1 // pred_region
      _
    $region13: #{tpu_custom_call.1} parent=1 // pred_fallthru
      _
    // Predicated region
    $region14: #{tpu_custom_call.1} parent=1 // pred_check
      _
    $region15: #{tpu_custom_call.1} parent=1 // pred_check_branch
      %29 = sbr.rel (0) target = $region17
    $region16: #{tpu_custom_call.1} parent=1 // pred_region
      _
    $region17: #{tpu_custom_call.1} parent=1 // pred_fallthru
      _
    // Predicated region
    $region18: #{tpu_custom_call.1} parent=1 // pred_check
      _
    $region19: #{tpu_custom_call.1} parent=1 // pred_check_branch
      %31 = sbr.rel (0) target = $region21
    $region20: #{tpu_custom_call.1} parent=1 // pred_region
      _
    $region21: #{tpu_custom_call.1} parent=1 // pred_fallthru
      _
    // Predicated region
    $region22: #{tpu_custom_call.1} parent=1 // pred_check
      _
    $region23: #{tpu_custom_call.1} parent=1 // pred_check_branch
      %33 = sbr.rel (0) target = $region25
    $region24: #{tpu_custom_call.1} parent=1 // pred_region
      %34 = dma.done [#allocation3], 256
    $region25: #{tpu_custom_call.1} parent=1 // pred_fallthru
      _
    %v35 = vld [vmem:[#allocation2] sm:$0xff]
    %v36 = vld [vmem:[#allocation2 + $0x8] sm:$0xff]
    %v39 = vcombine.high %v35, %v35
    %v40 = vcombine.high %v36, %v36
    %vm43 = vcmask 1043456
    %v44 = vsel %vm43, %v35, 0.0
    %v45 = vsel %vm43, %v39, 0.0
    %v46 = vadd.f32 %v44, %v45
    %47 = vadd.xlane.f32.xlu0 %v46
    %v48 = vpop.xlane.xlu0 %47
    %v49 = vsel %vm43, %v36, 0.0
    %v50 = vsel %vm43, %v40, 0.0
    %v51 = vadd.f32 %v49, %v50
    %52 = vadd.xlane.f32.xlu0 %v51
    %v53 = vpop.xlane.xlu0 %52
    %v54 = vmul.f32 %v48, 0.00390625
    %v55 = vmul.f32 %v53, 0.00390625
    %v56 = vld [vmem:[%s1] sm:$0xf]
    %v57 = vld [vmem:[%s2] sm:$0x1]
    %v59 = vlaneseq
    %v60 = vshrl.u32 %v59, 7
    %v61 = vsub.s32 0, %v60
    %v62 = vrot.slane %v57, %v61
    %v66 = vlaneseq
    %v67 = vand.u32 %v66, 127
    %v68 = vlaneseq
    %v69 = vshrl.u32 %v68, 7
    %v70 = vsub.s32 %v67, %v69
    %v71 = vrot.slane %v54, %v70
    %v72 = vlaneseq
    %v73 = vshrl.u32 %v72, 7
    %v74 = vsub.s32 %v67, %v73
    %v75 = vrot.slane %v55, %v74
    %vm76 = vcmask 1041409
    %v77 = vsel %vm76, %v75, %v71
    %vm78 = vcmask 31744
    %v79 = vsel %vm78, %v77, 0
    %v82 = vsel %vm43, %v56, 0
    %84 = vmatprep.subr.mxu0 0.0
    %85 = vmatpush1.msra.mxu0 %v82
    %86 = vmatprep.subr.mxu0 0.0
    %87 = vmatpush1.msra.mxu0 0.0
    %88 = vmatprep.subr.mxu0 0.0
    %89 = vmatpush1.msra.mxu0 0.0
    %90 = vmatprep.subr.mxu0 0.0
    %91 = vmatpush1.msra.mxu0 0.0
    %92 = vmatprep.subr.mxu0 0.0
    %93 = vmatpush1.msra.mxu0 0.0
    %94 = vmatprep.subr.mxu0 0.0
    %95 = vmatpush1.msra.mxu0 0.0
    %96 = vmatprep.subr.mxu0 0.0
    %97 = vmatpush1.msra.mxu0 0.0
    %98 = vmatprep.subr.mxu0 0.0
    %99 = vmatpush1.msra.mxu0 0.0
    %100 = vmatprep.subr.mxu0 0.0
    %101 = vmatpush1.msra.mxu0 0.0
    %102 = vmatprep.subr.mxu0 0.0
    %103 = vmatpush1.msra.mxu0 0.0
    %104 = vmatprep.subr.mxu0 0.0
    %105 = vmatpush1.msra.mxu0 0.0
    %106 = vmatprep.subr.mxu0 0.0
    %107 = vmatpush1.msra.mxu0 0.0
    %108 = vmatprep.subr.mxu0 0.0
    %109 = vmatpush1.msra.mxu0 0.0
    %110 = vmatprep.subr.mxu0 0.0
    %111 = vmatpush1.msra.mxu0 0.0
    %112 = vmatprep.subr.mxu0 0.0
    %113 = vmatpush1.msra.mxu0 0.0
    %114 = vmatprep.subr.mxu0 0.0
    %115 = vmatpush1.msra.mxu0 0.0
    %116 = vmatprep.subr.mxu0 0.0
    %117 = vmatpush1.msra.mxu0 0.0
    %118 = vmatprep.subr.mxu0 0.0
    %119 = vmatpush1.msra.mxu0 0.0
    %120 = vmatprep.subr.mxu0 0.0
    %121 = vmatpush1.msra.mxu0 0.0
    %122 = vmatprep.subr.mxu0 0.0
    %123 = vmatpush1.msra.mxu0 0.0
    %124 = vmatprep.subr.mxu0 0.0
    %125 = vmatpush1.msra.mxu0 0.0
    %126 = vmatprep.subr.mxu0 0.0
    %127 = vmatpush1.msra.mxu0 0.0
    %128 = vmatprep.subr.mxu0 0.0
    %129 = vmatpush1.msra.mxu0 0.0
    %130 = vmatprep.subr.mxu0 0.0
    %131 = vmatpush1.msra.mxu0 0.0
    %132 = vmatprep.subr.mxu0 0.0
    %133 = vmatpush1.msra.mxu0 0.0
    %134 = vmatprep.subr.mxu0 0.0
    %135 = vmatpush1.msra.mxu0 0.0
    %136 = vmatprep.subr.mxu0 0.0
    %137 = vmatpush1.msra.mxu0 0.0
    %138 = vmatprep.subr.mxu0 0.0
    %139 = vmatpush1.msra.mxu0 0.0
    %140 = vmatprep.subr.mxu0 0.0
    %141 = vmatpush1.msra.mxu0 0.0
    %142 = vmatprep.subr.mxu0 0.0
    %143 = vmatpush1.msra.mxu0 0.0
    %144 = vmatprep.subr.mxu0 0.0
    %145 = vmatpush1.msra.mxu0 0.0
    %146 = vmatprep.subr.mxu0 0.0
    %147 = vmatpush1.msra.mxu0 0.0
    %148 = vmatprep.mubr.f32.mxu0 0.0
    %149 = vmatmul.mubr.f32.gmra.mrb[0].mxu0 %v79
    %v150 = vpop.f32.mrb[0].mxu0
    %v151 = vadd.f32 %v62, %v150
    %v152 = vpop.f32.mrb[0].mxu0
    %153 = vdwg.mxu0
    %v154 = vmax.f32 %v151, 0.0
    %v155 = vld [vmem:[%s3] sm:$0xff]
    %v156 = vld [vmem:[%s4] sm:$0x1]
    %v158 = vlaneseq
    %v159 = vshrl.u32 %v158, 7
    %v160 = vsub.s32 0, %v159
    %v161 = vrot.slane %v156, %v160
    %vm163 = vcmask 64512
    %v165 = vsel %vm163, %v154, 0
    %167 = vmatprep.subr.mxu0 0.0
    %168 = vmatpush1.msra.mxu0 %v155
    %169 = vmatprep.subr.mxu0 0.0
    %170 = vmatpush1.msra.mxu0 0.0
    %171 = vmatprep.subr.mxu0 0.0
    %172 = vmatpush1.msra.mxu0 0.0
    %173 = vmatprep.subr.mxu0 0.0
    %174 = vmatpush1.msra.mxu0 0.0
    %175 = vmatprep.subr.mxu0 0.0
    %176 = vmatpush1.msra.mxu0 0.0
    %177 = vmatprep.subr.mxu0 0.0
    %178 = vmatpush1.msra.mxu0 0.0
    %179 = vmatprep.subr.mxu0 0.0
    %180 = vmatpush1.msra.mxu0 0.0
    %181 = vmatprep.subr.mxu0 0.0
    %182 = vmatpush1.msra.mxu0 0.0
    %183 = vmatprep.subr.mxu0 0.0
    %184 = vmatpush1.msra.mxu0 0.0
    %185 = vmatprep.subr.mxu0 0.0
    %186 = vmatpush1.msra.mxu0 0.0
    %187 = vmatprep.subr.mxu0 0.0
    %188 = vmatpush1.msra.mxu0 0.0
    %189 = vmatprep.subr.mxu0 0.0
    %190 = vmatpush1.msra.mxu0 0.0
    %191 = vmatprep.subr.mxu0 0.0
    %192 = vmatpush1.msra.mxu0 0.0
    %193 = vmatprep.subr.mxu0 0.0
    %194 = vmatpush1.msra.mxu0 0.0
    %195 = vmatprep.subr.mxu0 0.0
    %196 = vmatpush1.msra.mxu0 0.0
    %197 = vmatprep.subr.mxu0 0.0
    %198 = vmatpush1.msra.mxu0 0.0
    %199 = vmatprep.subr.mxu0 0.0
    %200 = vmatpush1.msra.mxu0 0.0
    %201 = vmatprep.subr.mxu0 0.0
    %202 = vmatpush1.msra.mxu0 0.0
    %203 = vmatprep.subr.mxu0 0.0
    %204 = vmatpush1.msra.mxu0 0.0
    %205 = vmatprep.subr.mxu0 0.0
    %206 = vmatpush1.msra.mxu0 0.0
    %207 = vmatprep.subr.mxu0 0.0
    %208 = vmatpush1.msra.mxu0 0.0
    %209 = vmatprep.subr.mxu0 0.0
    %210 = vmatpush1.msra.mxu0 0.0
    %211 = vmatprep.subr.mxu0 0.0
    %212 = vmatpush1.msra.mxu0 0.0
    %213 = vmatprep.subr.mxu0 0.0
    %214 = vmatpush1.msra.mxu0 0.0
    %215 = vmatprep.subr.mxu0 0.0
    %216 = vmatpush1.msra.mxu0 0.0
    %217 = vmatprep.subr.mxu0 0.0
    %218 = vmatpush1.msra.mxu0 0.0
    %219 = vmatprep.subr.mxu0 0.0
    %220 = vmatpush1.msra.mxu0 0.0
    %221 = vmatprep.subr.mxu0 0.0
    %222 = vmatpush1.msra.mxu0 0.0
    %223 = vmatprep.subr.mxu0 0.0
    %224 = vmatpush1.msra.mxu0 0.0
    %225 = vmatprep.subr.mxu0 0.0
    %226 = vmatpush1.msra.mxu0 0.0
    %227 = vmatprep.subr.mxu0 0.0
    %228 = vmatpush1.msra.mxu0 0.0
    %229 = vmatprep.subr.mxu0 0.0
    %230 = vmatpush1.msra.mxu0 0.0
    %231 = vmatprep.mubr.f32.mxu0 0.0
    %232 = vmatmul.mubr.f32.gmra.mrb[0].mxu0 %v165
    %v233 = vpop.f32.mrb[0].mxu0
    %v234 = vadd.f32 %v161, %v233
    %v235 = vpop.f32.mrb[0].mxu0
    %236 = vdwg.mxu0
    %v237 = vsub.f32 0.0, %v234
    %v238 = vmul.f32 %v237, 1.442695
    %v239 = vpow.pop %v238
    %v240 = vadd.f32 %v239, 1.0
    %v241 = vrcp.pop %v240
    %v242 = vmul.f32 1.0, %v241
    %vm243 = vcmask 25600
    %244 = vst.msk [vmem:[#allocation5] sm:$0x3] %vm243, %v242
    // Predicated region
    $region26: #{tpu_custom_call.1} parent=1 // pred_check
      _
    $region27: #{tpu_custom_call.1} parent=1 // pred_check_branch
      %246 = sbr.rel (0) target = $region29
    $region28: #{tpu_custom_call.1} parent=1 // pred_region
      %s248 = ssub.s32 32, 32
      %249 = vsyncadd [#allocation4], %s248
      %s251 = sshll.u32 [#allocation5], 4
      %s252 = int_to_ptr.vmem [resolvable:$true] %s251
      %254 = dma.vmem_to_hbm [thread:$0]  %s252, 32, %s5, [#allocation4]
    $region29: #{tpu_custom_call.1} parent=1 // pred_fallthru
      _
    // Predicated region
    $region30: #{tpu_custom_call.1} parent=1 // pred_check
      _
    $region31: #{tpu_custom_call.1} parent=1 // pred_check_branch
      %256 = sbr.rel (0) target = $region33
    $region32: #{tpu_custom_call.1} parent=1 // pred_region
      %257 = dma.done [#allocation4], 32
    $region33: #{tpu_custom_call.1} parent=1 // pred_fallthru
      _
    %258 = vsyncpa [#allocation3], 1
    %259 = vsyncpa [#allocation4], 1

</llo_original>
